<compile_context>
chip_gen: v7x
topology: tpu7x:2x2x1
jax: 0.10.0
libtpu: 0.0.40
codegen_flags: <defaults>
</compile_context>

<pallas_src>
import math

import jax
import jax.numpy as jnp
from jax.experimental import pallas as pl
from jax.experimental.pallas import tpu as pltpu


def make_pe_table(d_model: int, max_len: int) -> jnp.ndarray:
    """Buffer setup (mirrors PyTorch __init__): pe of shape (max_len, d_model), f32.

    Handles odd d_model (cos gets floor(d_model/2) columns), unlike the original.
    Built once at init; passed whole to the kernel (no per-call slicing/casting).
    """
    position = jnp.arange(0, max_len, dtype=jnp.float32)[:, None]            # (max_len, 1)
    div_term = jnp.exp(jnp.arange(0, d_model, 2, dtype=jnp.float32)
                       * (-math.log(10000.0) / d_model))                     # (ceil(D/2),)
    sin_part = jnp.sin(position * div_term)                                  # (max_len, ceil(D/2))
    cos_part = jnp.cos(position * div_term)                                  # (max_len, ceil(D/2))
    pe = jnp.zeros((max_len, d_model), dtype=jnp.float32)
    pe = pe.at[:, 0::2].set(sin_part)
    pe = pe.at[:, 1::2].set(cos_part[:, : d_model // 2])
    return pe


def _pos_enc_kernel(x_ref, pe_ref, o_ref):
    # x_ref / o_ref: (tile_b, tile_s, D); pe_ref: (tile_s, D) f32 table tile.
    # Cast the table tile to the activation dtype in-vreg (free under the DMA) and
    # add natively in that dtype (bf16 VALU on v6e/v7x; Mosaic upcasts on v5e).
    # pe broadcasts over the leading batch dim of the block.
    o_ref[...] = x_ref[...] + pe_ref[...].astype(o_ref.dtype)


def _round_up(a: int, b: int) -> int:
    return -(-a // b) * b


def _vmem_params():
    """(tile budget, vmem_limit_bytes, physical vmem) — generation aware."""
    phys = None
    try:
        phys = getattr(pltpu.get_tpu_info(), "vmem_capacity_bytes", None)
    except Exception:
        phys = None
    if not phys:
        phys = 64 * 2**20                      # conservative: assume v7x-sized VMEM
    budget = int(min(24 * 2**20, max(8 * 2**20, phys // 5)))   # ~24 MiB v5e/v6e, ~12.8 MiB v7x
    limit = int(min(phys * 3 // 4, max(32 * 2**20, budget + 12 * 2**20)))
    return budget, limit, int(phys)


def _footprint(tile_b: int, tile_s: int, D: int, itemsize: int) -> int:
    """Double-buffered VMEM bytes: (x-in + out) blocks + f32 pe block."""
    return 2 * tile_s * D * (2 * tile_b * itemsize + 4)


def _choose_tiles(B: int, S: int, D: int, itemsize: int, budget: int):
    """Pick (tile_b, tile_s):
    (a) full lane-dense D in every block,
    (b) fold as much of the batch as fits (pe DMA'd once per S-tile), else tile B,
    (c) never collapse to a single grid step when S allows >= 2 (target 4) steps,
        so the software pipeline overlaps and v7x shards steps across both TCs,
    (d) tile_s rounded to the dtype's native sublane pack, divisor of S preferred.
    """
    pack = max(8, 32 // max(1, itemsize))      # 8 f32 / 16 bf16 / 32 int8-fp8

    ts_floor = S if S < 8 else 8

    # ---- batch tile (tile_b has no (8,128) constraint; any value >= 1 is legal) ----
    if _footprint(B, ts_floor, D, itemsize) <= budget:
        tile_b = B
    else:
        pe_fp = 2 * ts_floor * D * 4
        per_b = 4 * ts_floor * D * itemsize
        tile_b = int(max(1, min(B, (budget - pe_fp) // max(1, per_b))))

    # ---- sequence tile: as large as the budget allows ... ----
    denom = 2 * D * (2 * tile_b * itemsize + 4)
    ts_budget = max(ts_floor, (budget // max(1, denom)) // 8 * 8)

    # ... capped so we keep several parallel grid steps when the shape allows it.
    batch_steps = (B + tile_b - 1) // tile_b
    target_steps = 2 if batch_steps >= 2 else 4
    target_steps = min(target_steps, max(1, S // max(1, ts_floor)))
    ts_cap = max(ts_floor, _round_up(-(-S // target_steps), 8))

    tile_s = min(ts_budget, ts_cap, _round_up(S, 8))
    if tile_s >= S:
        tile_s = S                               # single full-extent S block (legal for any S)
    else:
        tile_s = max(8, (tile_s // 8) * 8)
        if tile_s > pack:
            tile_s = (tile_s // pack) * pack     # keep packed rows full-width (bf16/int8)
        step = pack if tile_s >= pack else 8
        for t in range(tile_s, step - 1, -step):  # prefer a divisor of S (clean tail)
            if S % t == 0:
                tile_s = t
                break
    return tile_b, tile_s


def positional_encoding(x: jnp.ndarray, pe: jnp.ndarray, *, in_place: bool = False) -> jnp.ndarray:
    """x: (B, S, D); pe: (max_len, D) f32 table.  Returns x + pe[:S] broadcast over batch.

    The full f32 table is handed to pallas_call; the index_map restricts the DMA to the
    first S rows, so there is no per-call slice/cast pass over HBM.  Set in_place=True
    (and donate x at the jit boundary) to alias the output onto x.
    """
    B, S, D = x.shape
    max_len = pe.shape[0]
    if S > max_len:
        raise ValueError(f"sequence length {S} exceeds positional-encoding max_len {max_len}")
    if pe.dtype != jnp.float32:
        pe = pe.astype(jnp.float32)

    itemsize = jnp.dtype(x.dtype).itemsize
    budget, vmem_limit, phys = _vmem_params()
    tile_b, tile_s = _choose_tiles(B, S, D, itemsize, budget)
    # Make sure the compiler's scoped-VMEM limit covers the chosen blocks (+ headroom).
    vmem_limit = int(min(phys * 3 // 4,
                         max(vmem_limit, _footprint(tile_b, tile_s, D, itemsize) + 4 * 2**20)))

    # pe's block must have a multiple-of-8 row count or equal pe's full leading extent.
    # tile_s is only a non-multiple of 8 when tile_s == S; a pe-sized slice (tiny, 1/B
    # of x traffic at most) makes the extents match in that corner case.
    pe_arg = pe if tile_s % 8 == 0 else pe[:S]

    grid_b = pl.cdiv(B, tile_b)
    grid_s = pl.cdiv(S, tile_s)

    return pl.pallas_call(
        _pos_enc_kernel,
        out_shape=jax.ShapeDtypeStruct((B, S, D), x.dtype),
        grid_spec=pltpu.PrefetchScalarGridSpec(
            num_scalar_prefetch=0,
            grid=(grid_b, grid_s),
            in_specs=[
                # Lane-dense full-D blocks; batch folded into the block when it fits.
                pl.BlockSpec((tile_b, tile_s, D), lambda b, s: (b, s, 0)),
                # pe tile depends only on the S-tile index -> fetched once per S-tile,
                # and only the first ~S rows of the table are ever touched.
                pl.BlockSpec((tile_s, D), lambda b, s: (s, 0)),
            ],
            out_specs=pl.BlockSpec((tile_b, tile_s, D), lambda b, s: (b, s, 0)),
        ),
        compiler_params=pltpu.CompilerParams(
            dimension_semantics=("parallel", "parallel"),
            vmem_limit_bytes=vmem_limit,
        ),
        input_output_aliases=({0: 0} if in_place else {}),
    )(x, pe_arg)


if __name__ == "__main__":
    # Small shapes consistent with the module: batch=2, seq=8, d_model=32, max_len=64.
    B, S, D, MAX_LEN = 2, 8, 32, 64

    key = jax.random.PRNGKey(0)
    x = jax.random.normal(key, (B, S, D), dtype=jnp.float32)
    pe = make_pe_table(D, MAX_LEN)

    out = jax.block_until_ready(positional_encoding(x, pe))
    ref = x + pe[None, :S, :]
    assert out.shape == (B, S, D)
    assert out.dtype == x.dtype
    assert jnp.allclose(out, ref, atol=1e-6), "mismatch vs f32 reference"

    # bf16 path at a slightly larger shape: exercises a multi-step (pipelined /
    # megacore-shardable) grid, the dtype-aware sublane pack, and the in-kernel
    # f32->bf16 table cast.  Still tiny (<200 KiB).
    B2, S2, D2, MAX2 = 2, 256, 128, 512
    x2 = jax.random.normal(jax.random.PRNGKey(0), (B2, S2, D2), dtype=jnp.float32).astype(jnp.bfloat16)
    pe2 = make_pe_table(D2, MAX2)
    out2 = jax.block_until_ready(positional_encoding(x2, pe2))
    ref2 = x2 + pe2[None, :S2, :].astype(jnp.bfloat16)
    assert out2.dtype == jnp.bfloat16
    assert jnp.allclose(out2.astype(jnp.float32), ref2.astype(jnp.float32), atol=2e-2), \
        "mismatch vs bf16 reference"

    print("KERNEL_OK")
</pallas_src>

<mosaic_0001>
module attributes {stable_mosaic.version = 11 : i64} {
  func.func @_pos_enc_kernel(%arg0: i32, %arg1: i32, %arg2: memref<2x8x32xf32, #tpu.memory_space<vmem>>, %arg3: memref<8x32xf32, #tpu.memory_space<vmem>>, %arg4: memref<2x8x32xf32, #tpu.memory_space<vmem>>) attributes {dimension_semantics = [#tpu.dimension_semantics<parallel>, #tpu.dimension_semantics<parallel>], iteration_bounds = array<i64: 1, 1>, scalar_prefetch = 0 : i64, scratch_operands = 0 : i64, tpu.core_type = #tpu.core_type<tc>, window_params = [{transform_indices = @transform_0, window_bounds = array<i64: 2, 8, 32>}, {transform_indices = @transform_1, window_bounds = array<i64: 8, 32>}, {transform_indices = @transform_2, window_bounds = array<i64: 2, 8, 32>}]} {
    %c0 = arith.constant 0 : index
    %c0_0 = arith.constant 0 : index
    %c0_1 = arith.constant 0 : index
    %0 = vector.load %arg2[%c0, %c0_0, %c0_1] : memref<2x8x32xf32, #tpu.memory_space<vmem>>, vector<2x8x32xf32>
    %c0_2 = arith.constant 0 : index
    %c0_3 = arith.constant 0 : index
    %1 = vector.load %arg3[%c0_2, %c0_3] : memref<8x32xf32, #tpu.memory_space<vmem>>, vector<8x32xf32>
    %2 = vector.shape_cast %1 : vector<8x32xf32> to vector<1x8x32xf32>
    %3 = vector.broadcast %2 : vector<1x8x32xf32> to vector<2x8x32xf32>
    %4 = arith.addf %0, %3 : vector<2x8x32xf32>
    %c0_4 = arith.constant 0 : index
    %c0_5 = arith.constant 0 : index
    %c0_6 = arith.constant 0 : index
    %5 = vector.load %arg4[%c0_4, %c0_5, %c0_6] : memref<2x8x32xf32, #tpu.memory_space<vmem>>, vector<2x8x32xf32>
    tpu.vector_store %arg4[%c0_4, %c0_5, %c0_6], %4 {strides = array<i32>} : memref<2x8x32xf32, #tpu.memory_space<vmem>>, vector<2x8x32xf32>,
    return
  }
  func.func @transform_0(%arg0: i32, %arg1: i32) -> (i32, i32, i32) {
    %c0_i32 = arith.constant 0 : i32
    %c0_i32_0 = arith.constant 0 : i32
    return %arg0, %arg1, %c0_i32 : i32, i32, i32
  }
  func.func @transform_1(%arg0: i32, %arg1: i32) -> (i32, i32) {
    %c0_i32 = arith.constant 0 : i32
    %c0_i32_0 = arith.constant 0 : i32
    return %arg1, %c0_i32 : i32, i32
  }
  func.func @transform_2(%arg0: i32, %arg1: i32) -> (i32, i32, i32) {
    %c0_i32 = arith.constant 0 : i32
    %c0_i32_0 = arith.constant 0 : i32
    return %arg0, %arg1, %c0_i32 : i32, i32, i32
  }
}

</mosaic_0001>

<llo_original>
// kernel: tpu_custom_call.1
$region0: #{tpu_custom_call.1}
  #allocation0 [shape = 'u32[]', space=smem, size = 0x4, offset = 0x4, fixed_abs, tag = 'smem constant byte address 0x4 - core index']
  #allocation1 [shape = 'u32[144,128]{1,0:T(1,128)}', space=vmem, size = 0x12000, scoped, tag = 'internal scratch']
  %s0 = inlined_call_operand.vmem [shape: f32[2,8,32], index: 0, kind: input, shape index: {}]
  %s1 = inlined_call_operand.vmem [shape: f32[64,32], index: 1, kind: input, shape index: {}]
  %s2 = inlined_call_operand.hbm [shape: f32[2,8,32], index: 2, kind: output, shape index: {}]
  %s3 = sld [smem:[#allocation0]]
  $region18: #{tpu_custom_call.1} parent=0
    _
  %s5 = ssub.s32 1, %s3
  %s6 = scalar_select 0, %s5, %s3
  $region1: #{tpu_custom_call.1} parent=0
    #allocation2 [shape = 'u8[8192]{0}', space=vmem, size = 0x2000, scoped, tag = 'output window, operand 0, single buffered']
    #allocation3 [shape = 's32[1]{0}', space=sflag, size = 0x4, scoped, tag = 'scoped memory for tpu_custom_call.1']
    %7 = vsyncpa [#allocation3], 0
    // Predicated region
    $region2: #{tpu_custom_call.1} parent=1 // pred_check
      _
    $region3: #{tpu_custom_call.1} parent=1 // pred_check_branch
      %9 = sbr.rel (0) target = $region5
    $region4: #{tpu_custom_call.1} parent=1 // pred_region
      _
    $region5: #{tpu_custom_call.1} parent=1 // pred_fallthru
      _
    // Predicated region
    $region6: #{tpu_custom_call.1} parent=1 // pred_check
      _
    $region7: #{tpu_custom_call.1} parent=1 // pred_check_branch
      %11 = sbr.rel (0) target = $region9
    $region8: #{tpu_custom_call.1} parent=1 // pred_region
      _
    $region9: #{tpu_custom_call.1} parent=1 // pred_fallthru
      _
    %v12 = vld [vmem:[%s0] sm:$0xff]
    %v13 = vld [vmem:[%s0 + $0x8] sm:$0xff]
    %v14 = vld [vmem:[%s1] sm:$0xff]
    %v15 = vadd.f32 %v12, %v14
    %v16 = vadd.f32 %v13, %v14
    %vm17 = vcmask 261120
    %18 = vst.msk [vmem:[#allocation2] sm:$0xff] %vm17, %v15
    %19 = vst.msk [vmem:[#allocation2 + $0x8] sm:$0xff] %vm17, %v16
    // Predicated region
    $region10: #{tpu_custom_call.1} parent=1 // pred_check
      _
    $region11: #{tpu_custom_call.1} parent=1 // pred_check_branch
      %21 = sbr.rel (0) target = $region13
    $region12: #{tpu_custom_call.1} parent=1 // pred_region
      %s23 = ssub.s32 256, 256
      %24 = vsyncadd [#allocation3], %s23
      %s25 = sshll.u32 [#allocation2], 4
      %s26 = int_to_ptr.vmem [resolvable:$true] %s25
      %31 = dma.vmem_to_hbm [thread:$0]  %s26, 256, %s2, [#allocation3], 128, 128, 8
    $region13: #{tpu_custom_call.1} parent=1 // pred_fallthru
      _
    // Predicated region
    $region14: #{tpu_custom_call.1} parent=1 // pred_check
      _
    $region15: #{tpu_custom_call.1} parent=1 // pred_check_branch
      %33 = sbr.rel (0) target = $region17
    $region16: #{tpu_custom_call.1} parent=1 // pred_region
      %34 = dma.done [#allocation3], 256
    $region17: #{tpu_custom_call.1} parent=1 // pred_fallthru
      _
    %35 = vsyncpa [#allocation3], 1

</llo_original>
